<compile_context>
chip_gen: v5e
topology: v5e:2x2
jax: 0.10.0
libtpu: 0.0.40
codegen_flags: <defaults>
</compile_context>

<pallas_src>
import functools
import math

import jax
import jax.numpy as jnp
from jax import lax
from jax.experimental import pallas as pl
from jax.experimental.pallas import tpu as pltpu


# ----------------------------------------------------------------------------
# helpers
# ----------------------------------------------------------------------------
def _pick_tile(total, cap):
    """Largest tile <= cap that divides `total` and keeps (8,128) layouts legal."""
    if total <= cap:
        return total                      # full dim is always a legal block dim
    for t in range(cap, 0, -1):
        if total % t == 0 and t % 8 == 0:
            return t
    return total


def _probe_kernel(x_ref, o_ref):
    o_ref[...] = x_ref[...]


@functools.lru_cache(maxsize=None)
def _single_buffer_supported():
    """Capability probe: does this jax/Mosaic accept pipeline_mode=pl.Buffered(1)?

    Compiles and runs a tiny throwaway copy kernel once.  A failure here only
    disables the single-buffer optimization; it never masks errors coming from
    the real kernels (addresses the review note about the broad fallback).
    """
    if not hasattr(pl, "Buffered"):
        return False
    try:
        fn = pl.pallas_call(
            _probe_kernel,
            out_shape=jax.ShapeDtypeStruct((8, 128), jnp.float32),
            grid=(1,),
            in_specs=[pl.BlockSpec((8, 128), lambda i: (0, 0),
                                   pipeline_mode=pl.Buffered(1))],
            out_specs=pl.BlockSpec((8, 128), lambda i: (0, 0)),
        )
        jax.block_until_ready(fn(jnp.zeros((8, 128), jnp.float32)))
        return True
    except Exception:  # capability probe only
        return False


def _estimate_vmem_bytes(B, T, C, tq, ts, out_itemsize, resident_bufs):
    """Rough per-kernel resident-block VMEM estimate (bf16 operands)."""
    bf = 2
    k1 = (2 * ts * C * bf                       # x tile, double buffered
          + resident_bufs * 3 * C * C * bf      # fused (3, C, C) weight slab
          + resident_bufs * 3 * C * 4           # biases
          + 3 * 2 * ts * C * bf)                # q/k/v output tiles
    k2 = (2 * tq * C * bf                       # q tile
          + resident_bufs * 2 * T * C * bf      # per-batch K and V slabs
          + resident_bufs * C * C * bf          # output projection weights
          + 2 * tq * C * out_itemsize           # output tile
          + tq * C * 4)                         # f32 y scratch
    return max(k1, k2)


# ----------------------------------------------------------------------------
# kernel 1: fused QKV projection -> ReLU -> lane-dense q/k/v (bf16)
# ----------------------------------------------------------------------------
def _make_qkv_kernel(*, C, scale, out_dtype):
    def kernel(x_ref, w_ref, b_ref, q_ref, k_ref, v_ref):
        x = x_ref[0]                                              # (TS, C) bf16
        # Three N=C matmuls (q, k, v): only one (TS, C) f32 slab is live at a
        # time (bounded spill traffic), and each result is cast + emitted with
        # ONE full-width lane-dense store before the next matmul starts.
        for idx, (out_ref, s) in enumerate(
                ((q_ref, scale), (k_ref, None), (v_ref, None))):
            acc = jnp.dot(x, w_ref[idx], preferred_element_type=jnp.float32)
            acc = acc + b_ref[idx]                                # (1, C) bias
            act = jnp.maximum(acc, 0.0)                           # ReLU in f32
            if s is not None:
                act = act * s         # fold 1/sqrt(hd) into q once, here
            out_ref[0] = act.astype(out_dtype)
    return kernel


# ----------------------------------------------------------------------------
# kernel 2: causal ReLU-attention + fused output projection
# ----------------------------------------------------------------------------
def _make_attn_kernel(*, C, n_head, tq, compute_dtype):
    hd = C // n_head
    # NOTE: the diagonal-tile mask assumes TK == TQ; the kernel structure
    # enforces it (a single tile size `tq` is used for both q and k/v tiles).

    def kernel(q_ref, k_ref, v_ref, wp_ref, bp_ref, o_ref, y_ref):
        qi = pl.program_id(1)

        # Hoisted constant mask for the diagonal K tile only: there the query
        # and key position bases coincide, so causality is just a (TQ, TQ) tril.
        rows = lax.broadcasted_iota(jnp.int32, (tq, tq), 0)
        cols = lax.broadcasted_iota(jnp.int32, (tq, tq), 1)
        tril = cols <= rows

        diag_start = pl.multiple_of(qi * tq, tq)

        for h in range(n_head):                                   # unrolled (small H)
            lo = h * hd
            q_h = q_ref[0, :, lo:lo + hd]                         # (TQ, hd) bf16

            def unmasked_step(kt, acc):
                start = pl.multiple_of(kt * tq, tq)
                k_h = k_ref[0, pl.ds(start, tq), lo:lo + hd]      # (TQ, hd)
                v_h = v_ref[0, pl.ds(start, tq), lo:lo + hd]
                att = jnp.einsum("qd,kd->qk", q_h, k_h,
                                 preferred_element_type=jnp.float32)
                att = jnp.maximum(att, 0.0)                       # no mask off-diag
                return acc + jnp.dot(att.astype(compute_dtype), v_h,
                                     preferred_element_type=jnp.float32)

            # Off-diagonal K tiles are fully below the causal diagonal -> no
            # iota/compare/select.  Tiles above the diagonal are skipped
            # entirely (loop stops at qi).  The f32 accumulator is a fori_loop
            # carry (TQ x hd fits in vregs), not a VMEM-scratch RMW per tile.
            acc = lax.fori_loop(0, qi, unmasked_step,
                                jnp.zeros((tq, hd), jnp.float32))

            # Diagonal tile: causal mask fused with the ReLU as a single
            # select-to-zero (equivalent to masked_fill(-inf) + relu).
            k_h = k_ref[0, pl.ds(diag_start, tq), lo:lo + hd]
            v_h = v_ref[0, pl.ds(diag_start, tq), lo:lo + hd]
            att = jnp.einsum("qd,kd->qk", q_h, k_h,
                             preferred_element_type=jnp.float32)
            att = jnp.where(tril, jnp.maximum(att, 0.0), 0.0)
            acc = acc + jnp.dot(att.astype(compute_dtype), v_h,
                                preferred_element_type=jnp.float32)

            # One lane-offset store per head per q tile (replaces the previous
            # per-q-tile jnp.concatenate relayout of head accumulators).
            y_ref[:, lo:lo + hd] = acc

        # TODO(synk): attn_dropout / resid_dropout skipped (identity in eval mode).
        # Single K=C output projection on the MXU + residual-branch bias.
        out = jnp.dot(y_ref[...].astype(compute_dtype), wp_ref[...],
                      preferred_element_type=jnp.float32)
        o_ref[0] = (out + bp_ref[...]).astype(o_ref.dtype)

    return kernel


# ----------------------------------------------------------------------------
# wrapper
# ----------------------------------------------------------------------------
def _forward(x, w_attn, b_attn, w_proj, b_proj, *, n_head, tq, ts,
             compute_dtype, vmem_limit_bytes):
    B, T, C = x.shape
    hd = C // n_head
    cdt = compute_dtype
    single = _single_buffer_supported()

    # Cast matmul operands to bf16 once, outside the kernels (halves HBM
    # traffic); all accumulation stays f32 on the MXU.
    x_c = x.astype(cdt)
    # (C, 3C) -> (3, C, C) so the kernel selects the q/k/v weight block with a
    # leading-dim index (no lane slicing of the fused weight inside the kernel).
    w3 = jnp.transpose(w_attn.astype(cdt).reshape(C, 3, C), (1, 0, 2))
    b3 = b_attn.astype(jnp.float32).reshape(3, 1, C)
    wp_c = w_proj.astype(cdt)
    bp_f = b_proj.astype(jnp.float32)

    if vmem_limit_bytes is None:
        est = _estimate_vmem_bytes(B, T, C, tq, ts,
                                   jnp.dtype(x.dtype).itemsize,
                                   1 if single else 2)
        # The scoped default is only 16 MiB (v5e) / 32 MiB (v6e, v7x); request
        # what the resident blocks actually need, clamped to 64 MiB so the
        # request stays legal on v7x.  Pass vmem_limit_bytes explicitly to use
        # more of a 128 MiB part (v5e/v6e) with bigger tiles.
        vmem_limit_bytes = max(32 << 20, min(int(est * 1.5) + (4 << 20), 64 << 20))

    def spec(shape, index_map, resident=False):
        # Operands whose block index is constant across q tiles (weights,
        # biases, per-batch K/V slabs) are held in a SINGLE VMEM buffer:
        # double buffering them only wastes VMEM (matters on v7x's 64 MiB).
        if resident and single:
            return pl.BlockSpec(shape, index_map, pipeline_mode=pl.Buffered(1))
        return pl.BlockSpec(shape, index_map)

    # ---- kernel 1: fused QKV projection (lane-dense q/k/v outputs) ----
    qkv_shape = jax.ShapeDtypeStruct((B, T, C), cdt)
    q, k, v = pl.pallas_call(
        _make_qkv_kernel(C=C, scale=1.0 / math.sqrt(hd), out_dtype=cdt),
        out_shape=(qkv_shape, qkv_shape, qkv_shape),
        grid=(B, T // ts),
        in_specs=[
            pl.BlockSpec((1, ts, C), lambda b, s: (b, s, 0)),
            spec((3, C, C), lambda b, s: (0, 0, 0), resident=True),
            spec((3, 1, C), lambda b, s: (0, 0, 0), resident=True),
        ],
        out_specs=tuple(pl.BlockSpec((1, ts, C), lambda b, s: (b, s, 0))
                        for _ in range(3)),
        compiler_params=pltpu.CompilerParams(
            dimension_semantics=("parallel", "parallel"),
            vmem_limit_bytes=vmem_limit_bytes),
    )(x_c, w3, b3)

    # ---- kernel 2: causal attention + output projection ----
    # K/V stay VMEM-resident per batch element (constant block index across q
    # tiles -> DMA'd once per batch element); Buffered(1) keeps them in a
    # single buffer.  Only the batch axis is "parallel": with causal tile
    # skipping, a contiguous megacore split of the q axis would be ~1:3
    # imbalanced on v7x.
    # TODO(synk): for very long T, stream K/V tiles with pltpu.emit_pipeline
    # instead of holding the full (T, C) slabs in VMEM.
    # TODO(synk): for short T where the projections dominate, fuse kernel 1
    # into kernel 2 (compute K/V into VMEM scratch at qi == 0) to drop the
    # q/k/v HBM round trip.
    out = pl.pallas_call(
        _make_attn_kernel(C=C, n_head=n_head, tq=tq, compute_dtype=cdt),
        out_shape=jax.ShapeDtypeStruct((B, T, C), x.dtype),
        grid=(B, T // tq),
        in_specs=[
            pl.BlockSpec((1, tq, C), lambda b, qi: (b, qi, 0)),
            spec((1, T, C), lambda b, qi: (b, 0, 0), resident=True),
            spec((1, T, C), lambda b, qi: (b, 0, 0), resident=True),
            spec((C, C), lambda b, qi: (0, 0), resident=True),
            spec((1, C), lambda b, qi: (0, 0), resident=True),
        ],
        out_specs=pl.BlockSpec((1, tq, C), lambda b, qi: (b, qi, 0)),  # lane-dense
        scratch_shapes=[pltpu.VMEM((tq, C), jnp.float32)],
        compiler_params=pltpu.CompilerParams(
            dimension_semantics=("parallel", "arbitrary"),
            vmem_limit_bytes=vmem_limit_bytes),
    )(q, k, v, wp_c, bp_f)
    return out


def causal_self_attention(x, w_attn, b_attn, w_proj, b_proj, *, n_head,
                          q_tile=128, seq_tile=256,
                          compute_dtype=jnp.bfloat16, vmem_limit_bytes=None):
    """CausalSelfAttention forward (eval mode).

    x: (B, T, C).  Linear weights are pre-transposed to (in, out); biases are
    (1, out).  q_tile/seq_tile defaults match the 128-wide v5e MXU; raise them
    to 256/512 (plus an explicit vmem_limit_bytes) when tuning for v6e's
    256-wide MXU and 128 MiB VMEM.
    """
    B, T, C = x.shape
    assert C % n_head == 0, "n_embd must be divisible by n_head"
    tq = _pick_tile(T, q_tile)    # attention q/k tile (TK == TQ by construction)
    ts = _pick_tile(T, seq_tile)  # QKV-projection sequence tile
    return _forward(x, w_attn, b_attn, w_proj, b_proj,
                    n_head=n_head, tq=tq, ts=ts, compute_dtype=compute_dtype,
                    vmem_limit_bytes=vmem_limit_bytes)


# ----------------------------------------------------------------------------
# pure-JAX reference (mirrors the PyTorch forward in eval mode, with the same
# bf16-matmul-inputs / f32-accumulation policy as the kernels)
# ----------------------------------------------------------------------------
def reference(x, w_attn, b_attn, w_proj, b_proj, *, n_head,
              compute_dtype=jnp.bfloat16):
    B, T, C = x.shape
    hd = C // n_head
    f32, cdt = jnp.float32, compute_dtype
    scale = 1.0 / math.sqrt(hd)

    qkv = jnp.einsum("btc,cd->btd", x.astype(cdt), w_attn.astype(cdt),
                     preferred_element_type=f32) + b_attn[0]
    q, k, v = jnp.split(qkv, 3, axis=-1)
    q = (jax.nn.relu(q) * scale).astype(cdt)          # scale folded into q (same math)
    k = jax.nn.relu(k).astype(cdt)
    v = jax.nn.relu(v).astype(cdt)
    q = q.reshape(B, T, n_head, hd).transpose(0, 2, 1, 3)
    k = k.reshape(B, T, n_head, hd).transpose(0, 2, 1, 3)
    v = v.reshape(B, T, n_head, hd).transpose(0, 2, 1, 3)
    att = jnp.einsum("bhtd,bhsd->bhts", q, k, preferred_element_type=f32)
    mask = jnp.tril(jnp.ones((T, T), bool))
    att = jnp.where(mask[None, None], att, -jnp.inf)  # masked_fill(-inf)
    att = jax.nn.relu(att)                            # F.relu
    y = jnp.einsum("bhts,bhsd->bhtd", att.astype(cdt), v, preferred_element_type=f32)
    y = y.transpose(0, 2, 1, 3).reshape(B, T, C)
    out = jnp.einsum("btc,cd->btd", y.astype(cdt), w_proj.astype(cdt),
                     preferred_element_type=f32) + b_proj[0]
    return out.astype(x.dtype)


if __name__ == "__main__":
    B, T, C, n_head = 2, 8, 32, 4   # block_size == T

    key = jax.random.PRNGKey(0)
    kx, k1, k2, k3, k4 = jax.random.split(key, 5)

    x = jax.random.normal(kx, (B, T, C), jnp.float32)
    # deterministic synthetic parameters (Linear weights stored as (in, out))
    w_attn = jax.random.normal(k1, (C, 3 * C), jnp.float32) * (1.0 / math.sqrt(C))
    b_attn = jax.random.normal(k2, (1, 3 * C), jnp.float32) * 0.02
    w_proj = jax.random.normal(k3, (C, C), jnp.float32) * (1.0 / math.sqrt(C))
    b_proj = jax.random.normal(k4, (1, C), jnp.float32) * 0.02

    out = causal_self_attention(x, w_attn, b_attn, w_proj, b_proj, n_head=n_head)
    out = jax.block_until_ready(out)

    ref = reference(x, w_attn, b_attn, w_proj, b_proj, n_head=n_head)
    assert out.shape == (B, T, C)
    max_err = float(jnp.max(jnp.abs(out - ref)))
    assert jnp.allclose(out, ref, atol=2e-2, rtol=2e-2), (
        f"mismatch vs reference (max abs err {max_err})")

    print("KERNEL_OK")
</pallas_src>

<mosaic_0001>
module attributes {stable_mosaic.version = 11 : i64} {
  func.func @_probe_kernel(%arg0: i32, %arg1: memref<8x128xf32, #tpu.memory_space<vmem>>, %arg2: memref<8x128xf32, #tpu.memory_space<vmem>>) attributes {dimension_semantics = [#tpu.dimension_semantics<arbitrary>], iteration_bounds = array<i64: 1>, scalar_prefetch = 0 : i64, scratch_operands = 0 : i64, tpu.core_type = #tpu.core_type<tc>, window_params = [{pipeline_mode = #tpu.pipeline_mode<synchronous>, transform_indices = @transform_0, window_bounds = array<i64: 8, 128>}, {pipeline_mode = #tpu.pipeline_mode<synchronous>, transform_indices = @transform_1, window_bounds = array<i64: 8, 128>}]} {
    %c0 = arith.constant 0 : index
    %c0_0 = arith.constant 0 : index
    %0 = vector.load %arg1[%c0, %c0_0] : memref<8x128xf32, #tpu.memory_space<vmem>>, vector<8x128xf32>
    %c0_1 = arith.constant 0 : index
    %c0_2 = arith.constant 0 : index
    %1 = vector.load %arg2[%c0_1, %c0_2] : memref<8x128xf32, #tpu.memory_space<vmem>>, vector<8x128xf32>
    tpu.vector_store %arg2[%c0_1, %c0_2], %0 {strides = array<i32>} : memref<8x128xf32, #tpu.memory_space<vmem>>, vector<8x128xf32>,
    return
  }
  func.func @transform_0(%arg0: i32) -> (i32, i32) {
    %c0_i32 = arith.constant 0 : i32
    %c0_i32_0 = arith.constant 0 : i32
    %c0_i32_1 = arith.constant 0 : i32
    return %c0_i32, %c0_i32_0 : i32, i32
  }
  func.func @transform_1(%arg0: i32) -> (i32, i32) {
    %c0_i32 = arith.constant 0 : i32
    %c0_i32_0 = arith.constant 0 : i32
    %c0_i32_1 = arith.constant 0 : i32
    return %c0_i32, %c0_i32_0 : i32, i32
  }
}

module attributes {stable_mosaic.version = 11 : i64} {
  func.func @kernel(%arg0: i32, %arg1: i32, %arg2: memref<1x8x32xbf16, #tpu.memory_space<vmem>>, %arg3: memref<3x32x32xbf16, #tpu.memory_space<vmem>>, %arg4: memref<3x1x32xf32, #tpu.memory_space<vmem>>, %arg5: memref<1x8x32xbf16, #tpu.memory_space<vmem>>, %arg6: memref<1x8x32xbf16, #tpu.memory_space<vmem>>, %arg7: memref<1x8x32xbf16, #tpu.memory_space<vmem>>) attributes {dimension_semantics = [#tpu.dimension_semantics<parallel>, #tpu.dimension_semantics<parallel>], iteration_bounds = array<i64: 2, 1>, scalar_prefetch = 0 : i64, scratch_operands = 0 : i64, tpu.core_type = #tpu.core_type<tc>, window_params = [{transform_indices = @transform_0, window_bounds = array<i64: 1, 8, 32>}, {pipeline_mode = #tpu.pipeline_mode<synchronous>, transform_indices = @transform_1, window_bounds = array<i64: 3, 32, 32>}, {pipeline_mode = #tpu.pipeline_mode<synchronous>, transform_indices = @transform_2, window_bounds = array<i64: 3, 1, 32>}, {transform_indices = @transform_3, window_bounds = array<i64: 1, 8, 32>}, {transform_indices = @transform_4, window_bounds = array<i64: 1, 8, 32>}, {transform_indices = @transform_5, window_bounds = array<i64: 1, 8, 32>}]} {
    %c0 = arith.constant 0 : index
    %c0_0 = arith.constant 0 : index
    %c0_1 = arith.constant 0 : index
    %0 = vector.load %arg2[%c0, %c0_0, %c0_1] : memref<1x8x32xbf16, #tpu.memory_space<vmem>>, vector<1x8x32xbf16>
    %1 = vector.shape_cast %0 : vector<1x8x32xbf16> to vector<8x32xbf16>
    %c0_2 = arith.constant 0 : index
    %c0_3 = arith.constant 0 : index
    %c0_4 = arith.constant 0 : index
    %2 = vector.load %arg3[%c0_2, %c0_3, %c0_4] : memref<3x32x32xbf16, #tpu.memory_space<vmem>>, vector<1x32x32xbf16>
    %3 = vector.shape_cast %2 : vector<1x32x32xbf16> to vector<32x32xbf16>
    %cst = arith.constant dense<0.000000e+00> : vector<8x32xf32>
    %4 = tpu.matmul %1, %3, %cst {dimension_numbers = #tpu.dot_dimension_numbers<[1], [0], [0], [1], [0, 0, 1, 1], [], []>} : vector<8x32xbf16>, vector<32x32xbf16>, vector<8x32xf32> -> vector<8x32xf32>
    %c0_5 = arith.constant 0 : index
    %c0_6 = arith.constant 0 : index
    %c0_7 = arith.constant 0 : index
    %5 = vector.load %arg4[%c0_5, %c0_6, %c0_7] : memref<3x1x32xf32, #tpu.memory_space<vmem>>, vector<1x1x32xf32>
    %6 = vector.shape_cast %5 : vector<1x1x32xf32> to vector<1x32xf32>
    %7 = vector.broadcast %6 : vector<1x32xf32> to vector<8x32xf32>
    %8 = arith.addf %4, %7 : vector<8x32xf32>
    %cst_8 = arith.constant 0.000000e+00 : f32
    %9 = vector.broadcast %cst_8 : f32 to vector<8x32xf32>
    %10 = arith.maximumf %8, %9 : vector<8x32xf32>
    %cst_9 = arith.constant 0.353553385 : f32
    %11 = vector.broadcast %cst_9 : f32 to vector<8x32xf32>
    %12 = arith.mulf %10, %11 : vector<8x32xf32>
    %13 = arith.truncf %12 : vector<8x32xf32> to vector<8x32xbf16>
    %c0_10 = arith.constant 0 : index
    %c0_11 = arith.constant 0 : index
    %c0_12 = arith.constant 0 : index
    %14 = vector.load %arg5[%c0_10, %c0_11, %c0_12] : memref<1x8x32xbf16, #tpu.memory_space<vmem>>, vector<1x8x32xbf16>
    %15 = vector.shape_cast %14 : vector<1x8x32xbf16> to vector<8x32xbf16>
    %16 = vector.shape_cast %13 : vector<8x32xbf16> to vector<1x8x32xbf16>
    tpu.vector_store %arg5[%c0_10, %c0_11, %c0_12], %16 {strides = array<i32>} : memref<1x8x32xbf16, #tpu.memory_space<vmem>>, vector<1x8x32xbf16>,
    %c1 = arith.constant 1 : index
    %c0_13 = arith.constant 0 : index
    %c0_14 = arith.constant 0 : index
    %17 = vector.load %arg3[%c1, %c0_13, %c0_14] : memref<3x32x32xbf16, #tpu.memory_space<vmem>>, vector<1x32x32xbf16>
    %18 = vector.shape_cast %17 : vector<1x32x32xbf16> to vector<32x32xbf16>
    %cst_15 = arith.constant dense<0.000000e+00> : vector<8x32xf32>
    %19 = tpu.matmul %1, %18, %cst_15 {dimension_numbers = #tpu.dot_dimension_numbers<[1], [0], [0], [1], [0, 0, 1, 1], [], []>} : vector<8x32xbf16>, vector<32x32xbf16>, vector<8x32xf32> -> vector<8x32xf32>
    %c1_16 = arith.constant 1 : index
    %c0_17 = arith.constant 0 : index
    %c0_18 = arith.constant 0 : index
    %20 = vector.load %arg4[%c1_16, %c0_17, %c0_18] : memref<3x1x32xf32, #tpu.memory_space<vmem>>, vector<1x1x32xf32>
    %21 = vector.shape_cast %20 : vector<1x1x32xf32> to vector<1x32xf32>
    %22 = vector.broadcast %21 : vector<1x32xf32> to vector<8x32xf32>
    %23 = arith.addf %19, %22 : vector<8x32xf32>
    %cst_19 = arith.constant 0.000000e+00 : f32
    %24 = vector.broadcast %cst_19 : f32 to vector<8x32xf32>
    %25 = arith.maximumf %23, %24 : vector<8x32xf32>
    %26 = arith.truncf %25 : vector<8x32xf32> to vector<8x32xbf16>
    %c0_20 = arith.constant 0 : index
    %c0_21 = arith.constant 0 : index
    %c0_22 = arith.constant 0 : index
    %27 = vector.load %arg6[%c0_20, %c0_21, %c0_22] : memref<1x8x32xbf16, #tpu.memory_space<vmem>>, vector<1x8x32xbf16>
    %28 = vector.shape_cast %27 : vector<1x8x32xbf16> to vector<8x32xbf16>
    %29 = vector.shape_cast %26 : vector<8x32xbf16> to vector<1x8x32xbf16>
    tpu.vector_store %arg6[%c0_20, %c0_21, %c0_22], %29 {strides = array<i32>} : memref<1x8x32xbf16, #tpu.memory_space<vmem>>, vector<1x8x32xbf16>,
    %c2 = arith.constant 2 : index
    %c0_23 = arith.constant 0 : index
    %c0_24 = arith.constant 0 : index
    %30 = vector.load %arg3[%c2, %c0_23, %c0_24] : memref<3x32x32xbf16, #tpu.memory_space<vmem>>, vector<1x32x32xbf16>
    %31 = vector.shape_cast %30 : vector<1x32x32xbf16> to vector<32x32xbf16>
    %cst_25 = arith.constant dense<0.000000e+00> : vector<8x32xf32>
    %32 = tpu.matmul %1, %31, %cst_25 {dimension_numbers = #tpu.dot_dimension_numbers<[1], [0], [0], [1], [0, 0, 1, 1], [], []>} : vector<8x32xbf16>, vector<32x32xbf16>, vector<8x32xf32> -> vector<8x32xf32>
    %c2_26 = arith.constant 2 : index
    %c0_27 = arith.constant 0 : index
    %c0_28 = arith.constant 0 : index
    %33 = vector.load %arg4[%c2_26, %c0_27, %c0_28] : memref<3x1x32xf32, #tpu.memory_space<vmem>>, vector<1x1x32xf32>
    %34 = vector.shape_cast %33 : vector<1x1x32xf32> to vector<1x32xf32>
    %35 = vector.broadcast %34 : vector<1x32xf32> to vector<8x32xf32>
    %36 = arith.addf %32, %35 : vector<8x32xf32>
    %cst_29 = arith.constant 0.000000e+00 : f32
    %37 = vector.broadcast %cst_29 : f32 to vector<8x32xf32>
    %38 = arith.maximumf %36, %37 : vector<8x32xf32>
    %39 = arith.truncf %38 : vector<8x32xf32> to vector<8x32xbf16>
    %c0_30 = arith.constant 0 : index
    %c0_31 = arith.constant 0 : index
    %c0_32 = arith.constant 0 : index
    %40 = vector.load %arg7[%c0_30, %c0_31, %c0_32] : memref<1x8x32xbf16, #tpu.memory_space<vmem>>, vector<1x8x32xbf16>
    %41 = vector.shape_cast %40 : vector<1x8x32xbf16> to vector<8x32xbf16>
    %42 = vector.shape_cast %39 : vector<8x32xbf16> to vector<1x8x32xbf16>
    tpu.vector_store %arg7[%c0_30, %c0_31, %c0_32], %42 {strides = array<i32>} : memref<1x8x32xbf16, #tpu.memory_space<vmem>>, vector<1x8x32xbf16>,
    return
  }
  func.func @transform_0(%arg0: i32, %arg1: i32) -> (i32, i32, i32) {
    %c0_i32 = arith.constant 0 : i32
    %c0_i32_0 = arith.constant 0 : i32
    return %arg0, %arg1, %c0_i32 : i32, i32, i32
  }
  func.func @transform_1(%arg0: i32, %arg1: i32) -> (i32, i32, i32) {
    %c0_i32 = arith.constant 0 : i32
    %c0_i32_0 = arith.constant 0 : i32
    %c0_i32_1 = arith.constant 0 : i32
    %c0_i32_2 = arith.constant 0 : i32
    return %c0_i32, %c0_i32_0, %c0_i32_1 : i32, i32, i32
  }
  func.func @transform_2(%arg0: i32, %arg1: i32) -> (i32, i32, i32) {
    %c0_i32 = arith.constant 0 : i32
    %c0_i32_0 = arith.constant 0 : i32
    %c0_i32_1 = arith.constant 0 : i32
    %c0_i32_2 = arith.constant 0 : i32
    return %c0_i32, %c0_i32_0, %c0_i32_1 : i32, i32, i32
  }
  func.func @transform_3(%arg0: i32, %arg1: i32) -> (i32, i32, i32) {
    %c0_i32 = arith.constant 0 : i32
    %c0_i32_0 = arith.constant 0 : i32
    return %arg0, %arg1, %c0_i32 : i32, i32, i32
  }
  func.func @transform_4(%arg0: i32, %arg1: i32) -> (i32, i32, i32) {
    %c0_i32 = arith.constant 0 : i32
    %c0_i32_0 = arith.constant 0 : i32
    return %arg0, %arg1, %c0_i32 : i32, i32, i32
  }
  func.func @transform_5(%arg0: i32, %arg1: i32) -> (i32, i32, i32) {
    %c0_i32 = arith.constant 0 : i32
    %c0_i32_0 = arith.constant 0 : i32
    return %arg0, %arg1, %c0_i32 : i32, i32, i32
  }
}

</mosaic_0001>

<llo_original>
// kernel: tpu_custom_call.1
$region0: #{tpu_custom_call.1}
  #allocation0 [shape = 'u32[]', space=smem, size = 0x4, offset = 0x4, fixed_abs, tag = 'smem constant byte address 0x4 - core index']
  #allocation1 [shape = 'u32[72,128]{1,0:T(1,128)}', space=vmem, size = 0x9000, scoped, tag = 'internal scratch']
  %s0 = inlined_call_operand.hbm [shape: f32[8,128], index: 0, kind: input, shape index: {}]
  %s1 = inlined_call_operand.hbm [shape: f32[8,128], index: 1, kind: output, shape index: {}]
  %s2 = sld [smem:[#allocation0]]
  $region18: #{tpu_custom_call.1} parent=0
    _
  %s4 = ssub.s32 1, %s2
  %s5 = scalar_select 0, %s4, %s2
  $region1: #{tpu_custom_call.1} parent=0
    #allocation2 [shape = 'u8[4096]{0}', space=vmem, size = 0x1000, scoped, tag = 'input window, operand 0, single buffered']
    #allocation3 [shape = 's32[1]{0}', space=sflag, size = 0x4, scoped, tag = 'scoped memory for tpu_custom_call.1']
    #allocation4 [shape = 's32[1]{0}', space=sflag, size = 0x4, scoped, tag = 'scoped memory for tpu_custom_call.1']
    #allocation5 [shape = 'u8[4096]{0}', space=vmem, size = 0x1000, scoped, tag = 'output window, operand 0, single buffered']
    %6 = vsyncpa [#allocation3], 0
    %7 = vsyncpa [#allocation4], 0
    // Predicated region
    $region2: #{tpu_custom_call.1} parent=1 // pred_check
      _
    $region3: #{tpu_custom_call.1} parent=1 // pred_check_branch
      %9 = sbr.rel (0) target = $region5
    $region4: #{tpu_custom_call.1} parent=1 // pred_region
      %11 = vsyncadd [#allocation3], 0
      %s13 = sshll.u32 %s0, 4
      %s14 = int_to_ptr.hbm [resolvable:$true] %s13
      %s15 = sshll.u32 [#allocation2], 4
      %s16 = int_to_ptr.vmem [resolvable:$true] %s15
      %18 = dma.hbm_to_vmem [thread:$0]  %s14, 128, %s16, [#allocation3]
    $region5: #{tpu_custom_call.1} parent=1 // pred_fallthru
      _
    // Predicated region
    $region6: #{tpu_custom_call.1} parent=1 // pred_check
      _
    $region7: #{tpu_custom_call.1} parent=1 // pred_check_branch
      %20 = sbr.rel (0) target = $region9
    $region8: #{tpu_custom_call.1} parent=1 // pred_region
      %22 = dma.done [#allocation3], 128
    $region9: #{tpu_custom_call.1} parent=1 // pred_fallthru
      _
    %v23 = vld [vmem:[#allocation2] sm:$0xff]
    %24 = vst [vmem:[#allocation5] sm:$0xff] %v23
    // Predicated region
    $region10: #{tpu_custom_call.1} parent=1 // pred_check
      _
    $region11: #{tpu_custom_call.1} parent=1 // pred_check_branch
      %26 = sbr.rel (0) target = $region13
    $region12: #{tpu_custom_call.1} parent=1 // pred_region
      %28 = vsyncadd [#allocation4], 0
      %s30 = sshll.u32 [#allocation5], 4
      %s31 = int_to_ptr.vmem [resolvable:$true] %s30
      %s32 = sshll.u32 %s1, 4
      %s33 = int_to_ptr.hbm [resolvable:$true] %s32
      %35 = dma.vmem_to_hbm [thread:$0]  %s31, 128, %s33, [#allocation4]
    $region13: #{tpu_custom_call.1} parent=1 // pred_fallthru
      _
    // Predicated region
    $region14: #{tpu_custom_call.1} parent=1 // pred_check
      _
    $region15: #{tpu_custom_call.1} parent=1 // pred_check_branch
      %37 = sbr.rel (0) target = $region17
    $region16: #{tpu_custom_call.1} parent=1 // pred_region
      %39 = dma.done [#allocation4], 128
    $region17: #{tpu_custom_call.1} parent=1 // pred_fallthru
      _
    %40 = vsyncpa [#allocation3], 1
    %41 = vsyncpa [#allocation4], 1

// kernel: tpu_custom_call.1
$region0: #{tpu_custom_call.1}
  #allocation0 [shape = 'u32[]', space=smem, size = 0x4, offset = 0x4, fixed_abs, tag = 'smem constant byte address 0x4 - core index']
  #allocation1 [shape = 'u32[72,128]{1,0:T(1,128)}', space=vmem, size = 0x9000, scoped, tag = 'internal scratch']
  %s0 = inlined_call_operand.hbm [shape: bf16[2,8,32], index: 0, kind: input, shape index: {}]
  %s1 = inlined_call_operand.hbm [shape: bf16[3,32,32], index: 1, kind: input, shape index: {}]
  %s2 = inlined_call_operand.hbm [shape: f32[3,1,32], index: 2, kind: input, shape index: {}]
  %s3 = inlined_call_operand.hbm [shape: bf16[2,8,32], index: 3, kind: output, shape index: {0}]
  %s4 = inlined_call_operand.hbm [shape: bf16[2,8,32], index: 4, kind: output, shape index: {1}]
  %s5 = inlined_call_operand.hbm [shape: bf16[2,8,32], index: 5, kind: output, shape index: {2}]
  %6 = xla_tuple %s3, %s4, %s5
  %s7 = sld [smem:[#allocation0]]
  $region73: #{tpu_custom_call.1} parent=0
    _
  %s9 = ssub.s32 1, %s7
  %s10 = scalar_select 0, %s9, %s7
  $region1: #{tpu_custom_call.1} parent=0
    #allocation2 [shape = 'u8[4096]{0}', space=vmem, size = 0x1000, scoped, tag = 'input window, operand 0']
    #allocation3 [shape = 's32[2]{0}', space=sflag, size = 0x8, scoped, tag = 'scoped memory for tpu_custom_call.1']
    #allocation4 [shape = 's32[2]{0}', space=sflag, size = 0x8, scoped, tag = 'scoped memory for tpu_custom_call.1']
    #allocation5 [shape = 'u8[24576]{0}', space=vmem, size = 0x6000, scoped, tag = 'input window, operand 1, single buffered']
    #allocation6 [shape = 's32[1]{0}', space=sflag, size = 0x4, scoped, tag = 'scoped memory for tpu_custom_call.1']
    #allocation7 [shape = 'u8[1536]{0}', space=vmem, size = 0x800, scoped, tag = 'input window, operand 2, single buffered']
    #allocation8 [shape = 'u8[4096]{0}', space=vmem, size = 0x1000, scoped, tag = 'output window, operand 0']
    #allocation9 [shape = 'u8[4096]{0}', space=vmem, size = 0x1000, scoped, tag = 'output window, operand 1']
    #allocation10 [shape = 's32[2]{0}', space=sflag, size = 0x8, scoped, tag = 'scoped memory for tpu_custom_call.1']
    #allocation11 [shape = 'u8[4096]{0}', space=vmem, size = 0x1000, scoped, tag = 'output window, operand 2']
    %11 = vsyncpa [#allocation3], 0
    %s12 = scalar_lea.sflag [#allocation3], 1
    %13 = vsyncpa %s12, 0
    %14 = vsyncpa [#allocation6], 0
    %15 = vsyncpa [#allocation4], 0
    %s16 = scalar_lea.sflag [#allocation4], 1
    %17 = vsyncpa %s16, 0
    %18 = vsyncpa [#allocation10], 0
    %s19 = scalar_lea.sflag [#allocation10], 1
    %20 = vsyncpa %s19, 0
    loop: start=0, step=1, limit=4
    $region2: #{tpu_custom_call.1} parent=1 // loop_pre_header
      _
    $region3: #{tpu_custom_call.1} parent=1 // loop_header
      %s22 = sphi 0, %s26
      %p23 = scmp.ge.s32.totalorder %s22, 4
      %s29 = sphi 0, %s41
      %s30 = sphi 0, %s37
      %s31 = sphi 0, %s29
      %s32 = sphi 0, %s30
      %s33 = sphi 0, %s31
      %s34 = sphi 0, %s32
      %s46 = sphi 0, %s48
      %s49 = sphi 0, %s46
      %s50 = sphi 0, %s49
      %s66 = sphi 0, %s50
      %s70 = sphi 0, %s70
      %s72 = sphi 0, %s70
      %s73 = sphi 0, %s72
      %s87 = sphi 0, %s73
      %s91 = sphi 0, %s91
      %s93 = sphi 0, %s91
      %s94 = sphi 0, %s93
      %s108 = sphi 0, %s94
      %s116 = sphi 0, %s118
      %s119 = sphi 0, %s116
      %s120 = sphi 0, %s119
      %s136 = sphi 0, %s120
      %s144 = sphi 0, %s146
      %s147 = sphi 0, %s144
      %s148 = sphi 0, %s147
      %s164 = sphi 0, %s148
      %s172 = sphi 0, %s174
      %s175 = sphi 0, %s172
      %s176 = sphi 0, %s175
      %s192 = sphi 0, %s176
    $region4: #{tpu_custom_call.1} parent=1 // loop_header_branch
      %25 = sbr.rel (%p23) target = $region8
    $region5: #{tpu_custom_call.1} parent=1 // loop_body
      %s27 = ssub.s32 %s22, 1
      %s28 = ssub.s32 %s22, 2
      %s35 = sadd.s32 1, %s30
      %p36 = scmp.ge.s32.totalorder %s35, 1
      %s37 = scalar_select %p36, 0, %s35
      %s38 = sadd.s32 1, %s29
      %s39 = scalar_select %p36, %s38, %s29
      %p40 = scmp.ge.s32.totalorder %s39, 2
      %s41 = scalar_select %p40, 0, %s39
      %s42 = ssub.s32 %s29, %s41
      %s43 = ssub.s32 %s30, %s37
      %s44 = sor.u32 %s42, %s43
      %p45 = scmp.eq.s32.totalorder %s44, 0
      %s47 = sadd.s32 %s46, 1
      %s48 = scalar_select %p45, %s46, %s47
      %p51 = pneg %p45
      %p52 = scmp.eq.s32.totalorder %s22, 1
      %p53 = por %p51, %p52
      %p54 = scmp.ne.s32.totalorder %s46, %s49
      %p55 = scmp.eq.s32.totalorder %s22, 0
      %p56 = por %p54, %p55
      %p57 = scmp.ne.s32.totalorder %s46, %s49
      %p58 = scmp.eq.s32.totalorder %s27, 1
      %p59 = por %p57, %p58
      %p60 = scmp.ne.s32.totalorder %s49, %s50
      %p61 = scmp.eq.s32.totalorder %s27, 0
      %p62 = por %p60, %p61
      %p63 = scmp.ne.s32.totalorder %s49, %s50
      %p64 = scmp.eq.s32.totalorder %s28, 1
      %p65 = por %p63, %p64
      %p67 = scmp.ne.s32.totalorder %s50, %s66
      %p68 = scmp.eq.s32.totalorder %s28, 0
      %p69 = por %p67, %p68
      %s71 = sadd.s32 %s70, 1
      %p74 = scmp.eq.s32.totalorder %s22, 1
      %p75 = scmp.ne.s32.totalorder %s70, %s72
      %p76 = scmp.eq.s32.totalorder %s22, 0
      %p77 = por %p75, %p76
      %p78 = scmp.ne.s32.totalorder %s70, %s72
      %p79 = scmp.eq.s32.totalorder %s27, 1
      %p80 = por %p78, %p79
      %p81 = scmp.ne.s32.totalorder %s72, %s73
      %p82 = scmp.eq.s32.totalorder %s27, 0
      %p83 = por %p81, %p82
      %p84 = scmp.ne.s32.totalorder %s72, %s73
      %p85 = scmp.eq.s32.totalorder %s28, 1
      %p86 = por %p84, %p85
      %p88 = scmp.ne.s32.totalorder %s73, %s87
      %p89 = scmp.eq.s32.totalorder %s28, 0
      %p90 = por %p88, %p89
      %s92 = sadd.s32 %s91, 1
      %p95 = scmp.eq.s32.totalorder %s22, 1
      %p96 = scmp.ne.s32.totalorder %s91, %s93
      %p97 = scmp.eq.s32.totalorder %s22, 0
      %p98 = por %p96, %p97
      %p99 = scmp.ne.s32.totalorder %s91, %s93
      %p100 = scmp.eq.s32.totalorder %s27, 1
      %p101 = por %p99, %p100
      %p102 = scmp.ne.s32.totalorder %s93, %s94
      %p103 = scmp.eq.s32.totalorder %s27, 0
      %p104 = por %p102, %p103
      %p105 = scmp.ne.s32.totalorder %s93, %s94
      %p106 = scmp.eq.s32.totalorder %s28, 1
      %p107 = por %p105, %p106
      %p109 = scmp.ne.s32.totalorder %s94, %s108
      %p110 = scmp.eq.s32.totalorder %s28, 0
      %p111 = por %p109, %p110
      %s112 = ssub.s32 %s29, %s41
      %s113 = ssub.s32 %s30, %s37
      %s114 = sor.u32 %s112, %s113
      %p115 = scmp.eq.s32.totalorder %s114, 0
      %s117 = sadd.s32 %s116, 1
      %s118 = scalar_select %p115, %s116, %s117
      %p121 = pneg %p115
      %p122 = scmp.eq.s32.totalorder %s22, 1
      %p123 = por %p121, %p122
      %p124 = scmp.ne.s32.totalorder %s116, %s119
      %p125 = scmp.eq.s32.totalorder %s22, 0
      %p126 = por %p124, %p125
      %p127 = scmp.ne.s32.totalorder %s116, %s119
      %p128 = scmp.eq.s32.totalorder %s27, 1
      %p129 = por %p127, %p128
      %p130 = scmp.ne.s32.totalorder %s119, %s120
      %p131 = scmp.eq.s32.totalorder %s27, 0
      %p132 = por %p130, %p131
      %p133 = scmp.ne.s32.totalorder %s119, %s120
      %p134 = scmp.eq.s32.totalorder %s28, 1
      %p135 = por %p133, %p134
      %p137 = scmp.ne.s32.totalorder %s120, %s136
      %p138 = scmp.eq.s32.totalorder %s28, 0
      %p139 = por %p137, %p138
      %s140 = ssub.s32 %s29, %s41
      %s141 = ssub.s32 %s30, %s37
      %s142 = sor.u32 %s140, %s141
      %p143 = scmp.eq.s32.totalorder %s142, 0
      %s145 = sadd.s32 %s144, 1
      %s146 = scalar_select %p143, %s144, %s145
      %p149 = pneg %p143
      %p150 = scmp.eq.s32.totalorder %s22, 1
      %p151 = por %p149, %p150
      %p152 = scmp.ne.s32.totalorder %s144, %s147
      %p153 = scmp.eq.s32.totalorder %s22, 0
      %p154 = por %p152, %p153
      %p155 = scmp.ne.s32.totalorder %s144, %s147
      %p156 = scmp.eq.s32.totalorder %s27, 1
      %p157 = por %p155, %p156
      %p158 = scmp.ne.s32.totalorder %s147, %s148
      %p159 = scmp.eq.s32.totalorder %s27, 0
      %p160 = por %p158, %p159
      %p161 = scmp.ne.s32.totalorder %s147, %s148
      %p162 = scmp.eq.s32.totalorder %s28, 1
      %p163 = por %p161, %p162
      %p165 = scmp.ne.s32.totalorder %s148, %s164
      %p166 = scmp.eq.s32.totalorder %s28, 0
      %p167 = por %p165, %p166
      %s168 = ssub.s32 %s29, %s41
      %s169 = ssub.s32 %s30, %s37
      %s170 = sor.u32 %s168, %s169
      %p171 = scmp.eq.s32.totalorder %s170, 0
      %s173 = sadd.s32 %s172, 1
      %s174 = scalar_select %p171, %s172, %s173
      %p177 = pneg %p171
      %p178 = scmp.eq.s32.totalorder %s22, 1
      %p179 = por %p177, %p178
      %p180 = scmp.ne.s32.totalorder %s172, %s175
      %p181 = scmp.eq.s32.totalorder %s22, 0
      %p182 = por %p180, %p181
      %p183 = scmp.ne.s32.totalorder %s172, %s175
      %p184 = scmp.eq.s32.totalorder %s27, 1
      %p185 = por %p183, %p184
      %p186 = scmp.ne.s32.totalorder %s175, %s176
      %p187 = scmp.eq.s32.totalorder %s27, 0
      %p188 = por %p186, %p187
      %p189 = scmp.ne.s32.totalorder %s175, %s176
      %p190 = scmp.eq.s32.totalorder %s28, 1
      %p191 = por %p189, %p190
      %p193 = scmp.ne.s32.totalorder %s176, %s192
      %p194 = scmp.eq.s32.totalorder %s28, 0
      %p195 = por %p193, %p194
      %p196 = scmp.le.s32.totalorder 1, %s22
      %p197 = scmp.lt.s32.totalorder %s22, 3
      %p198 = pnand %p196, %p197
      %p199 = pneg %p198
      // Predicated region
      $region9: #{tpu_custom_call.1} parent=5 // pred_check
        _
      $region10: #{tpu_custom_call.1} parent=5 // pred_check_branch
        %201 = sbr.rel (%p198) target = $region12
      $region11: #{tpu_custom_call.1} parent=5 // pred_region
        %s202 = ssub.s32 %s22, 1
        // Predicated region
        $region13: #{tpu_custom_call.1} parent=11 // pred_check
          %p203 = pneg %p83
        $region14: #{tpu_custom_call.1} parent=11 // pred_check_branch
          %205 = sbr.rel (%p203) target = $region16
        $region15: #{tpu_custom_call.1} parent=11 // pred_region
          %207 = vsyncadd [#allocation6], 0
          %s208 = sshll.u32 %s1, 4
          %s209 = int_to_ptr.hbm [resolvable:$true] %s208
          %s210 = sshll.u32 [#allocation5], 4
          %s211 = int_to_ptr.vmem [resolvable:$true] %s210
          %216 = dma.hbm_to_vmem [thread:$0]  %s209, 768, %s211, [#allocation6], 64, 64, 4
        $region16: #{tpu_custom_call.1} parent=11 // pred_fallthru
          _
        // Predicated region
        $region17: #{tpu_custom_call.1} parent=11 // pred_check
          %p217 = pneg %p104
        $region18: #{tpu_custom_call.1} parent=11 // pred_check_branch
          %219 = sbr.rel (%p217) target = $region20
        $region19: #{tpu_custom_call.1} parent=11 // pred_region
          %221 = vsyncadd [#allocation6], 0
          %s222 = sshll.u32 %s2, 4
          %s223 = int_to_ptr.hbm [resolvable:$true] %s222
          %s224 = sshll.u32 [#allocation7], 4
          %s225 = int_to_ptr.vmem [resolvable:$true] %s224
          %230 = dma.hbm_to_vmem [thread:$0]  %s223, 48, %s225, [#allocation6], 16, 16, 1
        $region20: #{tpu_custom_call.1} parent=11 // pred_fallthru
          _
      $region12: #{tpu_custom_call.1} parent=5 // pred_fallthru
        _
      %p231 = scmp.lt.s32.totalorder %s22, 2
      // Predicated region
      $region21: #{tpu_custom_call.1} parent=5 // pred_check
        %p232 = pneg %p231
      $region22: #{tpu_custom_call.1} parent=5 // pred_check_branch
        %234 = sbr.rel (%p232) target = $region24
      $region23: #{tpu_custom_call.1} parent=5 // pred_region
        // Predicated region
        $region25: #{tpu_custom_call.1} parent=23 // pred_check
          %p235 = pneg %p56
        $region26: #{tpu_custom_call.1} parent=23 // pred_check_branch
          %237 = sbr.rel (%p235) target = $region28
        $region27: #{tpu_custom_call.1} parent=23 // pred_region
          %s238 = sand.u32 %s46, 1
          %s239 = scalar_lea.sflag [#allocation3], %s238
          %s240 = sand.u32 %s46, 1
          %s241 = smul.addr %s240, 4
          %s242 = scalar_lea.vmem [#allocation2], %s241
          %244 = vsyncadd %s239, 0
          %s245 = sadd.s32 %s30, %s29
          %s246 = smul.addr %s245, 4
          %s247 = scalar_lea.hbm %s0, %s246
          %s249 = sshll.u32 %s247, 4
          %s250 = int_to_ptr.hbm [resolvable:$true] %s249
          %s251 = sshll.u32 %s242, 4
          %s252 = int_to_ptr.vmem [resolvable:$true] %s251
          %254 = dma.hbm_to_vmem [thread:$0]  %s250, 64, %s252, %s239
        $region28: #{tpu_custom_call.1} parent=23 // pred_fallthru
          _
      $region24: #{tpu_custom_call.1} parent=5 // pred_fallthru
        _
      %p255 = scmp.le.s32.totalorder 1, %s22
      %p256 = scmp.lt.s32.totalorder %s22, 3
      %p257 = pnand %p255, %p256
      %p258 = pneg %p257
      // Predicated region
      $region29: #{tpu_custom_call.1} parent=5 // pred_check
        _
      $region30: #{tpu_custom_call.1} parent=5 // pred_check_branch
        %260 = sbr.rel (%p257) target = $region32
      $region31: #{tpu_custom_call.1} parent=5 // pred_region
        %s261 = ssub.s32 %s22, 1
        %s262 = sand.u32 %s49, 1
        %s263 = scalar_lea.sflag [#allocation3], %s262
        %s264 = sand.u32 %s49, 1
        %s265 = smul.addr %s264, 4
        %s266 = scalar_lea.vmem [#allocation2], %s265
        // Predicated region
        $region33: #{tpu_custom_call.1} parent=31 // pred_check
          %p267 = pneg %p62
        $region34: #{tpu_custom_call.1} parent=31 // pred_check_branch
          %269 = sbr.rel (%p267) target = $region36
        $region35: #{tpu_custom_call.1} parent=31 // pred_region
          %271 = dma.done %s263, 64
        $region36: #{tpu_custom_call.1} parent=31 // pred_fallthru
          _
        // Predicated region
        $region37: #{tpu_custom_call.1} parent=31 // pred_check
          %p272 = pneg %p83
        $region38: #{tpu_custom_call.1} parent=31 // pred_check_branch
          %274 = sbr.rel (%p272) target = $region40
        $region39: #{tpu_custom_call.1} parent=31 // pred_region
          %276 = dma.done [#allocation6], 768
        $region40: #{tpu_custom_call.1} parent=31 // pred_fallthru
          _
        // Predicated region
        $region41: #{tpu_custom_call.1} parent=31 // pred_check
          %p277 = pneg %p104
        $region42: #{tpu_custom_call.1} parent=31 // pred_check_branch
          %279 = sbr.rel (%p277) target = $region44
        $region43: #{tpu_custom_call.1} parent=31 // pred_region
          %281 = dma.done [#allocation6], 48
        $region44: #{tpu_custom_call.1} parent=31 // pred_fallthru
          _
        %s282 = sand.u32 %s49, 1
        %s283 = scalar_lea.sflag [#allocation3], %s282
        %s284 = sand.u32 %s49, 1
        %s285 = smul.addr %s284, 4
        %s286 = scalar_lea.vmem [#allocation2], %s285
        %p287 = pneg %p62
        %p288 = pneg %p59
        %p289 = pneg %p83
        %p290 = pneg %p80
        %p291 = pneg %p104
        %p292 = pneg %p101
        %p293 = pneg %p132
        %p294 = pneg %p129
        %s295 = sand.u32 %s119, 1
        %s296 = scalar_lea.sflag [#allocation4], %s295
        %s297 = sand.u32 %s119, 1
        %s298 = smul.addr %s297, 4
        %s299 = scalar_lea.vmem [#allocation8], %s298
        %p300 = pneg %p160
        %p301 = pneg %p157
        %s302 = sand.u32 %s27, 1
        %s303 = scalar_lea.sflag [#allocation10], %s302
        %s304 = sand.u32 %s147, 1
        %s305 = smul.addr %s304, 4
        %s306 = scalar_lea.vmem [#allocation9], %s305
        %p307 = pneg %p188
        %p308 = pneg %p185
        %s309 = sand.u32 %s27, 1
        %s310 = scalar_lea.sflag [#allocation10], %s309
        %s311 = sand.u32 %s175, 1
        %s312 = smul.addr %s311, 4
        %s313 = scalar_lea.vmem [#allocation11], %s312
        %v315 = vld [vmem:[%s266] sm:$0xf]
        %v316 = vld [vmem:[#allocation5] sm:$0xf]
        %v317 = vld [vmem:[#allocation5 + $0x4] sm:$0xf]
        %v318 = vld [vmem:[#allocation5 + $0x8] sm:$0xf]
        %v319 = vld [vmem:[#allocation5 + $0xc] sm:$0xf]
        %v320 = vld [vmem:[#allocation7] sm:$0x1]
        %v322 = vperm.slane %v320, 0
        %v328 = vunpack.c.l.b16 %v316
        %v329 = vunpack.c.l.b16 %v317
        %v330 = vunpack.c.l.b16 %v318
        %v331 = vunpack.c.l.b16 %v319
        %v332 = vpack.c.b16 %v329, %v328
        %v333 = vpack.c.b16 %v331, %v330
        %vm336 = vcmask 261120
        %v338 = vsel %vm336, %v315, 0
        %340 = vmatpush.bf16.msra.mxu0 0
        %341 = vmatpush.bf16.msra.mxu0 0
        %342 = vmatpush.bf16.msra.mxu0 0
        %343 = vmatpush.bf16.msra.mxu0 0
        %344 = vmatpush.bf16.msra.mxu0 0
        %345 = vmatpush.bf16.msra.mxu0 0
        %346 = vmatpush.bf16.msra.mxu0 %v333
        %347 = vmatpush.bf16.msra.mxu0 %v332
        %348 = vmatmul.bf16.gmra.mxu0 %v338
        %v349 = vpop.f32.mrf.mxu0
        %v350 = vadd.f32 %v322, %v349
        %v351 = vpop.f32.mrf.mxu0
        %352 = vdwg.mxu0
        %v353 = vmax.f32 %v350, 0.0
        %v354 = vmul.f32 %v353, 0.35355338
        %v355 = vpack.c.bf16 %v354, %v354
        %vm356 = vcmask 257024
        %357 = vst.msk [vmem:[%s299] sm:$0xf] %vm356, %v355
        %s358 = scalar_lea.vmem [#allocation5], 16
        %v359 = vld [vmem:[%s358] sm:$0xf]
        %v360 = vld [vmem:[%s358 + $0x4] sm:$0xf]
        %v361 = vld [vmem:[%s358 + $0x8] sm:$0xf]
        %v362 = vld [vmem:[%s358 + $0xc] sm:$0xf]
        %s363 = scalar_lea.vmem [#allocation7], 1
        %v364 = vld [vmem:[%s363] sm:$0x1]
        %v366 = vperm.slane %v364, 0
        %v372 = vunpack.c.l.b16 %v359
        %v373 = vunpack.c.l.b16 %v360
        %v374 = vunpack.c.l.b16 %v361
        %v375 = vunpack.c.l.b16 %v362
        %v376 = vpack.c.b16 %v373, %v372
        %v377 = vpack.c.b16 %v375, %v374
        %380 = vmatpush.bf16.msra.mxu0 0
        %381 = vmatpush.bf16.msra.mxu0 0
        %382 = vmatpush.bf16.msra.mxu0 0
        %383 = vmatpush.bf16.msra.mxu0 0
        %384 = vmatpush.bf16.msra.mxu0 0
        %385 = vmatpush.bf16.msra.mxu0 0
        %386 = vmatpush.bf16.msra.mxu0 %v377
        %387 = vmatpush.bf16.msra.mxu0 %v376
        %388 = vmatmul.bf16.gmra.mxu0 %v338
        %v389 = vpop.f32.mrf.mxu0
        %v390 = vadd.f32 %v366, %v389
        %v391 = vpop.f32.mrf.mxu0
        %392 = vdwg.mxu0
        %v393 = vmax.f32 %v390, 0.0
        %v394 = vpack.c.bf16 %v393, %v393
        %395 = vst.msk [vmem:[%s306] sm:$0xf] %vm356, %v394
        %s396 = scalar_lea.vmem [#allocation5], 32
        %v397 = vld [vmem:[%s396] sm:$0xf]
        %v398 = vld [vmem:[%s396 + $0x4] sm:$0xf]
        %v399 = vld [vmem:[%s396 + $0x8] sm:$0xf]
        %v400 = vld [vmem:[%s396 + $0xc] sm:$0xf]
        %s401 = scalar_lea.vmem [#allocation7], 2
        %v402 = vld [vmem:[%s401] sm:$0x1]
        %v404 = vperm.slane %v402, 0
        %v410 = vunpack.c.l.b16 %v397
        %v411 = vunpack.c.l.b16 %v398
        %v412 = vunpack.c.l.b16 %v399
        %v413 = vunpack.c.l.b16 %v400
        %v414 = vpack.c.b16 %v411, %v410
        %v415 = vpack.c.b16 %v413, %v412
        %418 = vmatpush.bf16.msra.mxu0 0
        %419 = vmatpush.bf16.msra.mxu0 0
        %420 = vmatpush.bf16.msra.mxu0 0
        %421 = vmatpush.bf16.msra.mxu0 0
        %422 = vmatpush.bf16.msra.mxu0 0
        %423 = vmatpush.bf16.msra.mxu0 0
        %424 = vmatpush.bf16.msra.mxu0 %v415
        %425 = vmatpush.bf16.msra.mxu0 %v414
        %426 = vmatmul.bf16.gmra.mxu0 %v338
        %v427 = vpop.f32.mrf.mxu0
        %v428 = vadd.f32 %v404, %v427
        %v429 = vpop.f32.mrf.mxu0
        %430 = vdwg.mxu0
        %v431 = vmax.f32 %v428, 0.0
        %v432 = vpack.c.bf16 %v431, %v431
        %433 = vst.msk [vmem:[%s313] sm:$0xf] %vm356, %v432
        %s434 = sand.u32 %s119, 1
        %s435 = scalar_lea.sflag [#allocation4], %s434
        %s436 = sand.u32 %s119, 1
        %s437 = smul.addr %s436, 4
        %s438 = scalar_lea.vmem [#allocation8], %s437
        %s439 = sand.u32 %s27, 1
        %s440 = scalar_lea.sflag [#allocation10], %s439
        %s441 = sand.u32 %s147, 1
        %s442 = smul.addr %s441, 4
        %s443 = scalar_lea.vmem [#allocation9], %s442
        %s444 = sand.u32 %s27, 1
        %s445 = scalar_lea.sflag [#allocation10], %s444
        %s446 = sand.u32 %s175, 1
        %s447 = smul.addr %s446, 4
        %s448 = scalar_lea.vmem [#allocation11], %s447
        // Predicated region
        $region45: #{tpu_custom_call.1} parent=31 // pred_check
          %p449 = pneg %p129
        $region46: #{tpu_custom_call.1} parent=31 // pred_check_branch
          %451 = sbr.rel (%p449) target = $region48
        $region47: #{tpu_custom_call.1} parent=31 // pred_region
          %453 = vsyncadd %s435, 0
          %s454 = sadd.s32 %s32, %s31
          %s455 = smul.addr %s454, 4
          %s456 = scalar_lea.hbm %s3, %s455
          %s458 = sshll.u32 %s438, 4
          %s459 = int_to_ptr.vmem [resolvable:$true] %s458
          %s460 = sshll.u32 %s456, 4
          %s461 = int_to_ptr.hbm [resolvable:$true] %s460
          %463 = dma.vmem_to_hbm [thread:$0]  %s459, 64, %s461, %s435
        $region48: #{tpu_custom_call.1} parent=31 // pred_fallthru
          _
        // Predicated region
        $region49: #{tpu_custom_call.1} parent=31 // pred_check
          %p464 = pneg %p157
        $region50: #{tpu_custom_call.1} parent=31 // pred_check_branch
          %466 = sbr.rel (%p464) target = $region52
        $region51: #{tpu_custom_call.1} parent=31 // pred_region
          %468 = vsyncadd %s440, 0
          %s469 = sadd.s32 %s32, %s31
          %s470 = smul.addr %s469, 4
          %s471 = scalar_lea.hbm %s4, %s470
          %s473 = sshll.u32 %s443, 4
          %s474 = int_to_ptr.vmem [resolvable:$true] %s473
          %s475 = sshll.u32 %s471, 4
          %s476 = int_to_ptr.hbm [resolvable:$true] %s475
          %478 = dma.vmem_to_hbm [thread:$0]  %s474, 64, %s476, %s440
        $region52: #{tpu_custom_call.1} parent=31 // pred_fallthru
          _
        // Predicated region
        $region53: #{tpu_custom_call.1} parent=31 // pred_check
          %p479 = pneg %p185
        $region54: #{tpu_custom_call.1} parent=31 // pred_check_branch
          %481 = sbr.rel (%p479) target = $region56
        $region55: #{tpu_custom_call.1} parent=31 // pred_region
          %483 = vsyncadd %s445, 0
          %s484 = sadd.s32 %s32, %s31
          %s485 = smul.addr %s484, 4
          %s486 = scalar_lea.hbm %s5, %s485
          %s488 = sshll.u32 %s448, 4
          %s489 = int_to_ptr.vmem [resolvable:$true] %s488
          %s490 = sshll.u32 %s486, 4
          %s491 = int_to_ptr.hbm [resolvable:$true] %s490
          %493 = dma.vmem_to_hbm [thread:$0]  %s489, 64, %s491, %s445
        $region56: #{tpu_custom_call.1} parent=31 // pred_fallthru
          _
      $region32: #{tpu_custom_call.1} parent=5 // pred_fallthru
        _
      %p494 = scmp.le.s32.totalorder 2, %s22
      // Predicated region
      $region57: #{tpu_custom_call.1} parent=5 // pred_check
        %p495 = pneg %p494
      $region58: #{tpu_custom_call.1} parent=5 // pred_check_branch
        %497 = sbr.rel (%p495) target = $region60
      $region59: #{tpu_custom_call.1} parent=5 // pred_region
        %s498 = ssub.s32 %s22, 2
        // Predicated region
        $region61: #{tpu_custom_call.1} parent=59 // pred_check
          %p499 = pneg %p135
        $region62: #{tpu_custom_call.1} parent=59 // pred_check_branch
          %501 = sbr.rel (%p499) target = $region64
        $region63: #{tpu_custom_call.1} parent=59 // pred_region
          %s502 = sand.u32 %s120, 1
          %s503 = scalar_lea.sflag [#allocation4], %s502
          %s504 = sand.u32 %s120, 1
          %s505 = smul.addr %s504, 4
          %s506 = scalar_lea.vmem [#allocation8], %s505
          %508 = dma.done %s503, 64
        $region64: #{tpu_custom_call.1} parent=59 // pred_fallthru
          _
        // Predicated region
        $region65: #{tpu_custom_call.1} parent=59 // pred_check
          %p509 = pneg %p163
        $region66: #{tpu_custom_call.1} parent=59 // pred_check_branch
          %511 = sbr.rel (%p509) target = $region68
        $region67: #{tpu_custom_call.1} parent=59 // pred_region
          %s512 = sand.u32 %s28, 1
          %s513 = scalar_lea.sflag [#allocation10], %s512
          %s514 = sand.u32 %s148, 1
          %s515 = smul.addr %s514, 4
          %s516 = scalar_lea.vmem [#allocation9], %s515
          %518 = dma.done %s513, 64
        $region68: #{tpu_custom_call.1} parent=59 // pred_fallthru
          _
        // Predicated region
        $region69: #{tpu_custom_call.1} parent=59 // pred_check
          %p519 = pneg %p191
        $region70: #{tpu_custom_call.1} parent=59 // pred_check_branch
          %521 = sbr.rel (%p519) target = $region72
        $region71: #{tpu_custom_call.1} parent=59 // pred_region
          %s522 = sand.u32 %s28, 1
          %s523 = scalar_lea.sflag [#allocation10], %s522
          %s524 = sand.u32 %s176, 1
          %s525 = smul.addr %s524, 4
          %s526 = scalar_lea.vmem [#allocation11], %s525
          %528 = dma.done %s523, 64
        $region72: #{tpu_custom_call.1} parent=59 // pred_fallthru
          _
      $region60: #{tpu_custom_call.1} parent=5 // pred_fallthru
        _
    $region6: #{tpu_custom_call.1} parent=1 // loop_footer
      %s26 = sadd.s32 1, %s22
    $region7: #{tpu_custom_call.1} parent=1 // loop_footer_branch
      %21 = sbr.rel target = $region3
    $region8: #{tpu_custom_call.1} parent=1 // loop_exit
      _
    %529 = vsyncpa [#allocation3], 1
    %s530 = scalar_lea.sflag [#allocation3], 1
    %531 = vsyncpa %s530, 1
    %532 = vsyncpa [#allocation6], 1
    %533 = vsyncpa [#allocation4], 1
    %s534 = scalar_lea.sflag [#allocation4], 1
    %535 = vsyncpa %s534, 1
    %536 = vsyncpa [#allocation10], 1
    %s537 = scalar_lea.sflag [#allocation10], 1
    %538 = vsyncpa %s537, 1

</llo_original>
